<compile_context>
chip_gen: v7x
topology: tpu7x:2x2x1
jax: 0.10.0
libtpu: 0.0.40
codegen_flags: <defaults>
</compile_context>

<pallas_src>
import functools

import jax
import jax.numpy as jnp
from jax.experimental import pallas as pl
from jax.experimental.pallas import tpu as pltpu

_BN_EPS = 1e-5
_NEG_BIG = -1e30          # finite "minus infinity" for padded logit lanes
_LANE = 128
_SUBLANE = 8


def _round_up(a, m):
    return ((a + m - 1) // m) * m


def _vmem_capacity_bytes():
    """Physical per-core VMEM (128 MiB v5e/v6e, 64 MiB v7x); safe fallback."""
    try:
        info = pltpu.get_tpu_info()
        cap = getattr(info, "vmem_capacity_bytes", None)
        if cap:
            return int(cap)
    except Exception:
        pass
    return 64 * 1024 * 1024   # conservative: v7x per-TensorCore VMEM


# --------------------------------------------------------------------------
# Fused, row-tiled Pallas kernel.
# grid = (num_layers, num_row_tiles): layer axis outer (sequential), row-tile
# axis inner.  Per layer, the first row-tile step computes hw = h @ W (after
# applying the previous layer's BN + ReLU to the resident h scratch); every
# row-tile step then computes A_hat[tile] @ hw + b on the MXU.
# --------------------------------------------------------------------------
def make_fused_gcn_kernel(num_layers, n_real, n_pad, tile_n, f_act):
    inv_n = 1.0 / float(n_real)

    def kernel(x_ref, adj_ref, w0_ref, wl_ref, b_ref, g_ref, be_ref,
               o_ref, h_scr, hw_scr):
        l = pl.program_id(0)   # layer
        i = pl.program_id(1)   # row tile

        # ---- per-layer prologue (first row tile only) ---------------------
        @pl.when((i == 0) & (l == 0))
        def _():
            # hw = X @ W_0  (bf16 operands, f32 accumulation on the MXU)
            hw_scr[...] = jnp.dot(
                x_ref[...], w0_ref[...],
                preferred_element_type=jnp.float32).astype(jnp.bfloat16)

        @pl.when((i == 0) & (l > 0))
        def _():
            # Finish previous layer: BatchNorm1d (training mode, two-pass
            # biased variance over the n_real un-padded rows) + ReLU
            # (Dropout(p=0) == identity), then hw = h @ W_l for this layer.
            h = h_scr[...]
            if n_pad != n_real:
                row_mask = (jax.lax.broadcasted_iota(
                    jnp.int32, (n_pad, 1), 0) < n_real)
                hm = jnp.where(row_mask, h, 0.0)
            else:
                row_mask = None
                hm = h
            mean = jnp.sum(hm, axis=0, keepdims=True) * inv_n
            d = h - mean
            if row_mask is not None:
                d = jnp.where(row_mask, d, 0.0)
            var = jnp.sum(d * d, axis=0, keepdims=True) * inv_n
            h = (h - mean) * jax.lax.rsqrt(var + _BN_EPS)
            h = h * g_ref[0] + be_ref[0]
            h = jnp.maximum(h, 0.0)                      # ReLU
            hw_scr[...] = jnp.dot(
                h.astype(jnp.bfloat16), wl_ref[0],
                preferred_element_type=jnp.float32).astype(jnp.bfloat16)

        # ---- per row tile: A_hat[tile] @ (h @ W_l) + b_l -------------------
        acc = jnp.dot(adj_ref[...], hw_scr[...],
                      preferred_element_type=jnp.float32)
        acc = acc + b_ref[0]

        @pl.when(l < num_layers - 1)
        def _():
            row0 = pl.multiple_of(i * tile_n, tile_n)
            h_scr[pl.ds(row0, tile_n), :] = acc

        @pl.when(l == num_layers - 1)
        def _():
            # LogSoftmax over the lane-padded class dim; padded lanes carry a
            # -1e30 bias so they vanish under exp().
            m = jnp.max(acc, axis=-1, keepdims=True)
            sh = acc - m
            lse = jnp.log(jnp.sum(jnp.exp(sh), axis=-1, keepdims=True))
            o_ref[...] = sh - lse

    return kernel


# --------------------------------------------------------------------------
# Wrapper: one pallas_call for the whole network
# --------------------------------------------------------------------------
@functools.partial(jax.jit, static_argnames=("max_tile",))
def gcn_forward(x, adj_hat, params, max_tile=None):
    """Full fused GCN forward.  `params` is a list of per-layer dicts."""
    num_layers = len(params)
    assert num_layers >= 2
    n, f_in = x.shape
    out_dims = [p["w"].shape[1] for p in params]
    out_dim = out_dims[-1]

    # Lane-dense padding of every feature dim (full vreg occupancy, unmasked
    # stores); the A-matmul width is max(hidden, output) rounded to 128.
    f_in_pad = _round_up(f_in, _LANE)
    f_act = _round_up(max(out_dims), _LANE)

    # ---- row-tile selection sized against the per-generation VMEM budget --
    phys = _vmem_capacity_bytes()
    budget = int(phys * 0.75)

    full = _round_up(max(n, _SUBLANE), _SUBLANE)
    cands = sorted({full, 2048, 1024, 512, 256, 128, 64, 32, 16, 8},
                   reverse=True)
    cands = [t for t in cands
             if t <= full and (max_tile is None or t <= max_tile)]
    if not cands:
        cands = [_SUBLANE]

    def _need_bytes(t, npad):
        return (2 * t * npad * 2            # adj row tile (bf16, 2 buffers)
                + 2 * npad * f_in_pad * 2   # x (bf16, resident)
                + 2 * f_in_pad * f_act * 2  # W_0 (bf16)
                + 2 * f_act * f_act * 2     # stacked W_l block (bf16)
                + 2 * t * f_act * 4         # output tile (f32)
                + npad * f_act * 4          # h scratch (f32)
                + npad * f_act * 2          # (h @ W) scratch (bf16)
                + (1 << 20))                # bias/gamma/beta + slack

    tile_n = cands[-1]
    for t in cands:
        if _need_bytes(t, _round_up(n, t)) <= budget:
            tile_n = t
            break
    n_pad = _round_up(n, tile_n)
    num_tiles = n_pad // tile_n
    vmem_limit = int(min(budget,
                         max(_need_bytes(tile_n, n_pad) + (8 << 20),
                             32 << 20)))

    # ---- wrapper-side casts / padding: bf16 adjacency, x and weights ------
    adj_p = jnp.pad(adj_hat.astype(jnp.bfloat16),
                    ((0, n_pad - n), (0, n_pad - n)))
    x_p = jnp.pad(x.astype(jnp.bfloat16),
                  ((0, n_pad - n), (0, f_in_pad - f_in)))

    w0 = params[0]["w"].astype(jnp.bfloat16)
    w0_p = jnp.pad(w0, ((0, f_in_pad - w0.shape[0]),
                        (0, f_act - w0.shape[1])))

    # Stacked per-layer tensors; a dummy leading block keeps index_map == l.
    wl_blocks = [jnp.zeros((f_act, f_act), jnp.bfloat16)]
    for p in params[1:]:
        w = p["w"].astype(jnp.bfloat16)
        wl_blocks.append(jnp.pad(w, ((0, f_act - w.shape[0]),
                                     (0, f_act - w.shape[1]))))
    wl_p = jnp.stack(wl_blocks, axis=0)                    # (L, f_act, f_act)

    b_blocks = []
    for li, p in enumerate(params):
        b = p["b"].reshape(1, -1).astype(jnp.float32)
        fill = _NEG_BIG if li == num_layers - 1 else 0.0
        b_blocks.append(jnp.pad(b, ((0, 0), (0, f_act - b.shape[1])),
                                constant_values=fill))
    b_p = jnp.stack(b_blocks, axis=0)                      # (L, 1, f_act)

    g_blocks = [jnp.ones((1, f_act), jnp.float32)]
    be_blocks = [jnp.zeros((1, f_act), jnp.float32)]
    for p in params[:-1]:
        g = p["gamma"].reshape(1, -1).astype(jnp.float32)
        be = p["beta"].reshape(1, -1).astype(jnp.float32)
        g_blocks.append(jnp.pad(g, ((0, 0), (0, f_act - g.shape[1])),
                                constant_values=1.0))
        be_blocks.append(jnp.pad(be, ((0, 0), (0, f_act - be.shape[1]))))
    g_p = jnp.stack(g_blocks, axis=0)                      # (L, 1, f_act)
    be_p = jnp.stack(be_blocks, axis=0)

    grid = (num_layers, num_tiles)
    in_specs = [
        pl.BlockSpec((n_pad, f_in_pad), lambda l, i: (0, 0)),     # x (resident)
        pl.BlockSpec((tile_n, n_pad), lambda l, i: (i, 0)),       # adj row tile
        pl.BlockSpec((f_in_pad, f_act), lambda l, i: (0, 0)),     # W_0
        pl.BlockSpec((1, f_act, f_act), lambda l, i: (l, 0, 0)),  # W_l
        pl.BlockSpec((1, 1, f_act), lambda l, i: (l, 0, 0)),      # b_l
        pl.BlockSpec((1, 1, f_act), lambda l, i: (l, 0, 0)),      # gamma_{l-1}
        pl.BlockSpec((1, 1, f_act), lambda l, i: (l, 0, 0)),      # beta_{l-1}
    ]
    out_spec = pl.BlockSpec((tile_n, f_act), lambda l, i: (i, 0))

    out_padded = pl.pallas_call(
        make_fused_gcn_kernel(num_layers, n, n_pad, tile_n, f_act),
        grid=grid,
        out_shape=jax.ShapeDtypeStruct((n_pad, f_act), jnp.float32),
        in_specs=in_specs,
        out_specs=out_spec,
        scratch_shapes=[pltpu.VMEM((n_pad, f_act), jnp.float32),   # h
                        pltpu.VMEM((n_pad, f_act), jnp.bfloat16)], # h @ W
        compiler_params=pltpu.CompilerParams(
            # Both axes carry resident VMEM scratch state -> "arbitrary".
            dimension_semantics=("arbitrary", "arbitrary"),
            vmem_limit_bytes=vmem_limit),
    )(x_p, adj_p, w0_p, wl_p, b_p, g_p, be_p)

    # TODO(synk): keep the lane-padded layout end-to-end if the consumer can;
    # this slice is an extra XLA copy.
    return out_padded[:n, :out_dim]


# --------------------------------------------------------------------------
# Pure-JAX f32 reference (module semantics, for a sanity check)
# --------------------------------------------------------------------------
def gcn_forward_ref(x, adj_hat, params):
    h = x
    for layer in params[:-1]:
        h = adj_hat @ (h @ layer["w"]) + layer["b"]
        mean = jnp.mean(h, axis=0, keepdims=True)
        var = jnp.mean((h - mean) ** 2, axis=0, keepdims=True)
        h = (h - mean) / jnp.sqrt(var + _BN_EPS)
        h = h * layer["gamma"] + layer["beta"]
        h = jnp.maximum(h, 0.0)
    last = params[-1]
    out = adj_hat @ (h @ last["w"]) + last["b"]
    return jax.nn.log_softmax(out, axis=-1)


# --------------------------------------------------------------------------
# Parameter / graph construction
# --------------------------------------------------------------------------
def make_params(key, input_dim, hidden_dim, output_dim, num_layers):
    dims = [input_dim] + [hidden_dim] * (num_layers - 1) + [output_dim]
    params = []
    for li in range(num_layers):
        key, kw = jax.random.split(key)
        fin, fout = dims[li], dims[li + 1]
        scale = jnp.sqrt(2.0 / (fin + fout)).astype(jnp.float32)
        w = jax.random.normal(kw, (fin, fout), dtype=jnp.float32) * scale
        b = jnp.zeros((1, fout), dtype=jnp.float32)
        layer = {"w": w, "b": b}
        if li < num_layers - 1:
            layer["gamma"] = jnp.ones((1, fout), dtype=jnp.float32)
            layer["beta"] = jnp.zeros((1, fout), dtype=jnp.float32)
        params.append(layer)
    return params


def make_norm_adj(key, n):
    """Random symmetric graph -> D^-1/2 (A + I) D^-1/2 (dense)."""
    a = (jax.random.uniform(key, (n, n)) < 0.3).astype(jnp.float32)
    a = jnp.maximum(a, a.T)
    a = a * (1.0 - jnp.eye(n, dtype=jnp.float32))
    a_hat = a + jnp.eye(n, dtype=jnp.float32)
    deg = jnp.sum(a_hat, axis=1)
    d_inv_sqrt = 1.0 / jnp.sqrt(deg)
    return a_hat * d_inv_sqrt[:, None] * d_inv_sqrt[None, :]


# --------------------------------------------------------------------------
if __name__ == "__main__":
    key = jax.random.PRNGKey(0)
    k_x, k_adj, k_par, k_x2, k_adj2 = jax.random.split(key, 5)

    input_dim, hidden_dim, output_dim = 8, 32, 4
    num_layers = 3   # dropout = 0.0 (identity); return_embeds = False
    params = make_params(k_par, input_dim, hidden_dim, output_dim, num_layers)

    # --- test 1: small graph; single row tile => adjacency stays resident --
    n1 = 16
    x1 = jax.random.normal(k_x, (n1, input_dim), dtype=jnp.float32)
    adj1 = make_norm_adj(k_adj, n1)
    out1 = jax.block_until_ready(gcn_forward(x1, adj1, params))
    assert out1.shape == (n1, output_dim)
    ref1 = gcn_forward_ref(x1, adj1, params)
    # bf16 matmul operands => small drift vs the pure-f32 reference.
    assert jnp.allclose(out1, ref1, atol=5e-2, rtol=5e-2), "mismatch (test 1)"
    assert jnp.allclose(jnp.exp(out1).sum(-1), 1.0, atol=1e-4)

    # --- test 2: multi-tile streaming path (row tile 32, 80 rows padded to
    #     96, masked BatchNorm statistics) ----------------------------------
    n2 = 80
    x2 = jax.random.normal(k_x2, (n2, input_dim), dtype=jnp.float32)
    adj2 = make_norm_adj(k_adj2, n2)
    out2 = jax.block_until_ready(gcn_forward(x2, adj2, params, max_tile=32))
    assert out2.shape == (n2, output_dim)
    ref2 = gcn_forward_ref(x2, adj2, params)
    assert jnp.allclose(out2, ref2, atol=1e-1, rtol=1e-1), "mismatch (test 2)"
    assert jnp.allclose(jnp.exp(out2).sum(-1), 1.0, atol=1e-4)

    print("KERNEL_OK")
</pallas_src>

<mosaic_0001>
module attributes {stable_mosaic.version = 11 : i64} {
  func.func @kernel(%arg0: i32, %arg1: i32, %arg2: memref<16x128xbf16, #tpu.memory_space<vmem>>, %arg3: memref<16x16xbf16, #tpu.memory_space<vmem>>, %arg4: memref<128x128xbf16, #tpu.memory_space<vmem>>, %arg5: memref<1x128x128xbf16, #tpu.memory_space<vmem>>, %arg6: memref<1x1x128xf32, #tpu.memory_space<vmem>>, %arg7: memref<1x1x128xf32, #tpu.memory_space<vmem>>, %arg8: memref<1x1x128xf32, #tpu.memory_space<vmem>>, %arg9: memref<16x128xf32, #tpu.memory_space<vmem>>, %arg10: memref<16x128xf32, #tpu.memory_space<vmem>>, %arg11: memref<16x128xbf16, #tpu.memory_space<vmem>>) attributes {dimension_semantics = [#tpu.dimension_semantics<arbitrary>, #tpu.dimension_semantics<arbitrary>], iteration_bounds = array<i64: 3, 1>, scalar_prefetch = 0 : i64, scratch_operands = 2 : i64, tpu.core_type = #tpu.core_type<tc>, window_params = [{pipeline_mode = #tpu.pipeline_mode<synchronous>, transform_indices = @transform_0, window_bounds = array<i64: 16, 128>}, {transform_indices = @transform_1, window_bounds = array<i64: 16, 16>}, {pipeline_mode = #tpu.pipeline_mode<synchronous>, transform_indices = @transform_2, window_bounds = array<i64: 128, 128>}, {transform_indices = @transform_3, window_bounds = array<i64: 1, 128, 128>}, {transform_indices = @transform_4, window_bounds = array<i64: 1, 1, 128>}, {transform_indices = @transform_5, window_bounds = array<i64: 1, 1, 128>}, {transform_indices = @transform_6, window_bounds = array<i64: 1, 1, 128>}, {transform_indices = @transform_7, window_bounds = array<i64: 16, 128>}]} {
    %c0_i32 = arith.constant 0 : i32
    %0 = arith.cmpi eq, %arg1, %c0_i32 : i32
    %c0_i32_0 = arith.constant 0 : i32
    %1 = arith.cmpi eq, %arg0, %c0_i32_0 : i32
    %2 = arith.andi %0, %1 : i1
    %3 = arith.extui %2 : i1 to i32
    %c0_i32_1 = arith.constant 0 : i32
    %4 = arith.cmpi ne, %3, %c0_i32_1 : i32
    scf.if %4 {
      %c0_14 = arith.constant 0 : index
      %c0_15 = arith.constant 0 : index
      %23 = vector.load %arg2[%c0_14, %c0_15] : memref<16x128xbf16, #tpu.memory_space<vmem>>, vector<16x128xbf16>
      %c0_16 = arith.constant 0 : index
      %c0_17 = arith.constant 0 : index
      %24 = vector.load %arg4[%c0_16, %c0_17] : memref<128x128xbf16, #tpu.memory_space<vmem>>, vector<128x128xbf16>
      %cst_18 = arith.constant dense<0.000000e+00> : vector<16x128xf32>
      %25 = tpu.matmul %23, %24, %cst_18 {dimension_numbers = #tpu.dot_dimension_numbers<[1], [0], [0], [1], [0, 0, 1, 1], [], []>} : vector<16x128xbf16>, vector<128x128xbf16>, vector<16x128xf32> -> vector<16x128xf32>
      %26 = arith.truncf %25 : vector<16x128xf32> to vector<16x128xbf16>
      %c0_19 = arith.constant 0 : index
      %c0_20 = arith.constant 0 : index
      %27 = vector.load %arg11[%c0_19, %c0_20] : memref<16x128xbf16, #tpu.memory_space<vmem>>, vector<16x128xbf16>
      tpu.vector_store %arg11[%c0_19, %c0_20], %26 {strides = array<i32>} : memref<16x128xbf16, #tpu.memory_space<vmem>>, vector<16x128xbf16>,
    } else {
    }
    %c0_i32_2 = arith.constant 0 : i32
    %5 = arith.cmpi eq, %arg1, %c0_i32_2 : i32
    %c0_i32_3 = arith.constant 0 : i32
    %6 = arith.cmpi sgt, %arg0, %c0_i32_3 : i32
    %7 = arith.andi %5, %6 : i1
    %8 = arith.extui %7 : i1 to i32
    %c0_i32_4 = arith.constant 0 : i32
    %9 = arith.cmpi ne, %8, %c0_i32_4 : i32
    scf.if %9 {
      %c0_14 = arith.constant 0 : index
      %c0_15 = arith.constant 0 : index
      %23 = vector.load %arg10[%c0_14, %c0_15] : memref<16x128xf32, #tpu.memory_space<vmem>>, vector<16x128xf32>
      %cst_16 = arith.constant dense<0.000000e+00> : vector<128xf32>
      %24 = vector.multi_reduction <add>, %23, %cst_16 [0] : vector<16x128xf32> to vector<128xf32>
      %25 = vector.shape_cast %24 : vector<128xf32> to vector<1x128xf32>
      %cst_17 = arith.constant 6.250000e-02 : f32
      %26 = vector.broadcast %cst_17 : f32 to vector<1x128xf32>
      %27 = arith.mulf %25, %26 : vector<1x128xf32>
      %28 = vector.broadcast %27 : vector<1x128xf32> to vector<16x128xf32>
      %29 = arith.subf %23, %28 : vector<16x128xf32>
      %30 = arith.mulf %29, %29 : vector<16x128xf32>
      %cst_18 = arith.constant dense<0.000000e+00> : vector<128xf32>
      %31 = vector.multi_reduction <add>, %30, %cst_18 [0] : vector<16x128xf32> to vector<128xf32>
      %32 = vector.shape_cast %31 : vector<128xf32> to vector<1x128xf32>
      %cst_19 = arith.constant 6.250000e-02 : f32
      %33 = vector.broadcast %cst_19 : f32 to vector<1x128xf32>
      %34 = arith.mulf %32, %33 : vector<1x128xf32>
      %35 = vector.broadcast %27 : vector<1x128xf32> to vector<16x128xf32>
      %36 = arith.subf %23, %35 : vector<16x128xf32>
      %cst_20 = arith.constant 9.99999974E-6 : f32
      %37 = vector.broadcast %cst_20 : f32 to vector<1x128xf32>
      %38 = arith.addf %34, %37 : vector<1x128xf32>
      %39 = math.rsqrt %38 : vector<1x128xf32>
      %40 = vector.broadcast %39 : vector<1x128xf32> to vector<16x128xf32>
      %41 = arith.mulf %36, %40 : vector<16x128xf32>
      %c0_21 = arith.constant 0 : index
      %c0_22 = arith.constant 0 : index
      %c0_23 = arith.constant 0 : index
      %42 = vector.load %arg7[%c0_21, %c0_22, %c0_23] : memref<1x1x128xf32, #tpu.memory_space<vmem>>, vector<1x1x128xf32>
      %43 = vector.shape_cast %42 : vector<1x1x128xf32> to vector<1x128xf32>
      %44 = vector.broadcast %43 : vector<1x128xf32> to vector<16x128xf32>
      %45 = arith.mulf %41, %44 : vector<16x128xf32>
      %c0_24 = arith.constant 0 : index
      %c0_25 = arith.constant 0 : index
      %c0_26 = arith.constant 0 : index
      %46 = vector.load %arg8[%c0_24, %c0_25, %c0_26] : memref<1x1x128xf32, #tpu.memory_space<vmem>>, vector<1x1x128xf32>
      %47 = vector.shape_cast %46 : vector<1x1x128xf32> to vector<1x128xf32>
      %48 = vector.broadcast %47 : vector<1x128xf32> to vector<16x128xf32>
      %49 = arith.addf %45, %48 : vector<16x128xf32>
      %cst_27 = arith.constant 0.000000e+00 : f32
      %50 = vector.broadcast %cst_27 : f32 to vector<16x128xf32>
      %51 = arith.maximumf %49, %50 : vector<16x128xf32>
      %52 = arith.truncf %51 : vector<16x128xf32> to vector<16x128xbf16>
      %c0_28 = arith.constant 0 : index
      %c0_29 = arith.constant 0 : index
      %c0_30 = arith.constant 0 : index
      %53 = vector.load %arg5[%c0_28, %c0_29, %c0_30] : memref<1x128x128xbf16, #tpu.memory_space<vmem>>, vector<1x128x128xbf16>
      %54 = vector.shape_cast %53 : vector<1x128x128xbf16> to vector<128x128xbf16>
      %cst_31 = arith.constant dense<0.000000e+00> : vector<16x128xf32>
      %55 = tpu.matmul %52, %54, %cst_31 {dimension_numbers = #tpu.dot_dimension_numbers<[1], [0], [0], [1], [0, 0, 1, 1], [], []>} : vector<16x128xbf16>, vector<128x128xbf16>, vector<16x128xf32> -> vector<16x128xf32>
      %56 = arith.truncf %55 : vector<16x128xf32> to vector<16x128xbf16>
      %c0_32 = arith.constant 0 : index
      %c0_33 = arith.constant 0 : index
      %57 = vector.load %arg11[%c0_32, %c0_33] : memref<16x128xbf16, #tpu.memory_space<vmem>>, vector<16x128xbf16>
      tpu.vector_store %arg11[%c0_32, %c0_33], %56 {strides = array<i32>} : memref<16x128xbf16, #tpu.memory_space<vmem>>, vector<16x128xbf16>,
    } else {
    }
    %c0 = arith.constant 0 : index
    %c0_5 = arith.constant 0 : index
    %10 = vector.load %arg3[%c0, %c0_5] : memref<16x16xbf16, #tpu.memory_space<vmem>>, vector<16x16xbf16>
    %c0_6 = arith.constant 0 : index
    %c0_7 = arith.constant 0 : index
    %11 = vector.load %arg11[%c0_6, %c0_7] : memref<16x128xbf16, #tpu.memory_space<vmem>>, vector<16x128xbf16>
    %cst = arith.constant dense<0.000000e+00> : vector<16x128xf32>
    %12 = tpu.matmul %10, %11, %cst {dimension_numbers = #tpu.dot_dimension_numbers<[1], [0], [0], [1], [0, 0, 1, 1], [], []>} : vector<16x16xbf16>, vector<16x128xbf16>, vector<16x128xf32> -> vector<16x128xf32>
    %c0_8 = arith.constant 0 : index
    %c0_9 = arith.constant 0 : index
    %c0_10 = arith.constant 0 : index
    %13 = vector.load %arg6[%c0_8, %c0_9, %c0_10] : memref<1x1x128xf32, #tpu.memory_space<vmem>>, vector<1x1x128xf32>
    %14 = vector.shape_cast %13 : vector<1x1x128xf32> to vector<1x128xf32>
    %15 = vector.broadcast %14 : vector<1x128xf32> to vector<16x128xf32>
    %16 = arith.addf %12, %15 : vector<16x128xf32>
    %c2_i32 = arith.constant 2 : i32
    %17 = arith.cmpi slt, %arg0, %c2_i32 : i32
    %18 = arith.extui %17 : i1 to i32
    %c0_i32_11 = arith.constant 0 : i32
    %19 = arith.cmpi ne, %18, %c0_i32_11 : i32
    scf.if %19 {
      %c16_i32 = arith.constant 16 : i32
      %23 = arith.muli %arg1, %c16_i32 : i32
      %24 = tpu.assume_multiple %23, 16 : i32
      %25 = arith.index_cast %24 : i32 to index
      %c0_14 = arith.constant 0 : index
      %26 = vector.load %arg10[%25, %c0_14] : memref<16x128xf32, #tpu.memory_space<vmem>>, vector<16x128xf32>
      tpu.vector_store %arg10[%25, %c0_14], %16 {strides = array<i32>} : memref<16x128xf32, #tpu.memory_space<vmem>>, vector<16x128xf32>,
    } else {
    }
    %c2_i32_12 = arith.constant 2 : i32
    %20 = arith.cmpi eq, %arg0, %c2_i32_12 : i32
    %21 = arith.extui %20 : i1 to i32
    %c0_i32_13 = arith.constant 0 : i32
    %22 = arith.cmpi ne, %21, %c0_i32_13 : i32
    scf.if %22 {
      %cst_14 = arith.constant dense<0xFF800000> : vector<16xf32>
      %23 = vector.multi_reduction <maximumf>, %16, %cst_14 [1] : vector<16x128xf32> to vector<16xf32>
      %24 = vector.shape_cast %23 : vector<16xf32> to vector<16x1xf32>
      %25 = vector.broadcast %24 : vector<16x1xf32> to vector<16x128xf32>
      %26 = arith.subf %16, %25 : vector<16x128xf32>
      %27 = math.exp %26 : vector<16x128xf32>
      %cst_15 = arith.constant dense<0.000000e+00> : vector<16xf32>
      %28 = vector.multi_reduction <add>, %27, %cst_15 [1] : vector<16x128xf32> to vector<16xf32>
      %29 = vector.shape_cast %28 : vector<16xf32> to vector<16x1xf32>
      %30 = math.log %29 : vector<16x1xf32>
      %31 = vector.broadcast %30 : vector<16x1xf32> to vector<16x128xf32>
      %32 = arith.subf %26, %31 : vector<16x128xf32>
      %c0_16 = arith.constant 0 : index
      %c0_17 = arith.constant 0 : index
      %33 = vector.load %arg9[%c0_16, %c0_17] : memref<16x128xf32, #tpu.memory_space<vmem>>, vector<16x128xf32>
      tpu.vector_store %arg9[%c0_16, %c0_17], %32 {strides = array<i32>} : memref<16x128xf32, #tpu.memory_space<vmem>>, vector<16x128xf32>,
    } else {
    }
    return
  }
  func.func @transform_0(%arg0: i32, %arg1: i32) -> (i32, i32) {
    %c0_i32 = arith.constant 0 : i32
    %c0_i32_0 = arith.constant 0 : i32
    %c0_i32_1 = arith.constant 0 : i32
    return %c0_i32, %c0_i32_0 : i32, i32
  }
  func.func @transform_1(%arg0: i32, %arg1: i32) -> (i32, i32) {
    %c0_i32 = arith.constant 0 : i32
    %c0_i32_0 = arith.constant 0 : i32
    return %arg1, %c0_i32 : i32, i32
  }
  func.func @transform_2(%arg0: i32, %arg1: i32) -> (i32, i32) {
    %c0_i32 = arith.constant 0 : i32
    %c0_i32_0 = arith.constant 0 : i32
    %c0_i32_1 = arith.constant 0 : i32
    return %c0_i32, %c0_i32_0 : i32, i32
  }
  func.func @transform_3(%arg0: i32, %arg1: i32) -> (i32, i32, i32) {
    %c0_i32 = arith.constant 0 : i32
    %c0_i32_0 = arith.constant 0 : i32
    %c0_i32_1 = arith.constant 0 : i32
    return %arg0, %c0_i32, %c0_i32_0 : i32, i32, i32
  }
  func.func @transform_4(%arg0: i32, %arg1: i32) -> (i32, i32, i32) {
    %c0_i32 = arith.constant 0 : i32
    %c0_i32_0 = arith.constant 0 : i32
    %c0_i32_1 = arith.constant 0 : i32
    return %arg0, %c0_i32, %c0_i32_0 : i32, i32, i32
  }
  func.func @transform_5(%arg0: i32, %arg1: i32) -> (i32, i32, i32) {
    %c0_i32 = arith.constant 0 : i32
    %c0_i32_0 = arith.constant 0 : i32
    %c0_i32_1 = arith.constant 0 : i32
    return %arg0, %c0_i32, %c0_i32_0 : i32, i32, i32
  }
  func.func @transform_6(%arg0: i32, %arg1: i32) -> (i32, i32, i32) {
    %c0_i32 = arith.constant 0 : i32
    %c0_i32_0 = arith.constant 0 : i32
    %c0_i32_1 = arith.constant 0 : i32
    return %arg0, %c0_i32, %c0_i32_0 : i32, i32, i32
  }
  func.func @transform_7(%arg0: i32, %arg1: i32) -> (i32, i32) {
    %c0_i32 = arith.constant 0 : i32
    %c0_i32_0 = arith.constant 0 : i32
    return %arg1, %c0_i32 : i32, i32
  }
}

</mosaic_0001>

<llo_original>
// kernel: gcn_forward.1
$region0: #{gcn_forward.1}
  #allocation0 [shape = 'u32[]', space=smem, size = 0x4, offset = 0x4, fixed_abs, tag = 'smem constant byte address 0x4 - core index']
  #allocation1 [shape = 'u32[144,128]{1,0:T(1,128)}', space=vmem, size = 0x12000, scoped, tag = 'internal scratch']
  #allocation2 [shape = 'f32[16,128]{1,0:T(8,128)}', space=vmem, size = 0x2000, scoped, tag = 'scratch operand']
  #allocation3 [shape = 'bf16[16,128]{1,0:T(16,128)(2,1)}', space=vmem, size = 0x1000, scoped, tag = 'scratch operand']
  %s0 = inlined_call_operand.vmem [shape: bf16[16,128], index: 0, kind: input, shape index: {}]
  %s1 = inlined_call_operand.vmem [shape: bf16[16,16], index: 1, kind: input, shape index: {}]
  %s2 = inlined_call_operand.vmem [shape: bf16[128,128], index: 2, kind: input, shape index: {}]
  %s3 = inlined_call_operand.vmem [shape: bf16[3,128,128], index: 3, kind: input, shape index: {}]
  %s4 = inlined_call_operand.vmem [shape: f32[3,1,128], index: 4, kind: input, shape index: {}]
  %s5 = inlined_call_operand.vmem [shape: f32[3,1,128], index: 5, kind: input, shape index: {}]
  %s6 = inlined_call_operand.vmem [shape: f32[3,1,128], index: 6, kind: input, shape index: {}]
  %s7 = inlined_call_operand.vmem [shape: f32[16,128], index: 7, kind: output, shape index: {}]
  %s8 = sld [smem:[#allocation0]]
  $region77: #{gcn_forward.1} parent=0
    _
  %s10 = ssub.s32 1, %s8
  %s11 = scalar_select 0, %s10, %s8
  loop: start=0, step=1, limit=5
  $region2: #{gcn_forward.1} parent=0 // loop_pre_header
    _
  $region3: #{gcn_forward.1} parent=0 // loop_header
    %s13 = sphi 0, %s17
    %p14 = scmp.ge.s32.totalorder %s13, 5
    %s20 = sphi 0, %s32
    %s21 = sphi 0, %s28
    %s22 = sphi 0, %s20
    %s23 = sphi 0, %s21
    %s24 = sphi 0, %s22
    %s25 = sphi 0, %s23
    %s33 = sphi 0, %s33
    %s35 = sphi 0, %s33
    %s36 = sphi 0, %s35
    %s50 = sphi 0, %s36
    %s56 = sphi 0, %s58
    %s59 = sphi 0, %s56
    %s60 = sphi 0, %s59
    %s76 = sphi 0, %s60
    %s80 = sphi 0, %s80
    %s82 = sphi 0, %s80
    %s83 = sphi 0, %s82
    %s97 = sphi 0, %s83
    %s103 = sphi 0, %s105
    %s106 = sphi 0, %s103
    %s107 = sphi 0, %s106
    %s123 = sphi 0, %s107
    %s129 = sphi 0, %s131
    %s132 = sphi 0, %s129
    %s133 = sphi 0, %s132
    %s149 = sphi 0, %s133
    %s155 = sphi 0, %s157
    %s158 = sphi 0, %s155
    %s159 = sphi 0, %s158
    %s175 = sphi 0, %s159
    %s181 = sphi 0, %s183
    %s184 = sphi 0, %s181
    %s185 = sphi 0, %s184
    %s201 = sphi 0, %s185
    %s207 = sphi 0, %s209
    %s210 = sphi 0, %s207
    %s211 = sphi 0, %s210
    %s227 = sphi 0, %s211
  $region4: #{gcn_forward.1} parent=0 // loop_header_branch
    %16 = sbr.rel (%p14) target = $region8
  $region5: #{gcn_forward.1} parent=0 // loop_body
    %s18 = ssub.s32 %s13, 1
    %s19 = ssub.s32 %s13, 2
    %s26 = sadd.s32 1, %s21
    %p27 = scmp.ge.s32.totalorder %s26, 1
    %s28 = scalar_select %p27, 0, %s26
    %s29 = sadd.s32 1, %s20
    %s30 = scalar_select %p27, %s29, %s20
    %p31 = scmp.ge.s32.totalorder %s30, 3
    %s32 = scalar_select %p31, 0, %s30
    %s34 = sadd.s32 %s33, 1
    %p37 = scmp.eq.s32.totalorder %s13, 2
    %p38 = scmp.ne.s32.totalorder %s33, %s35
    %p39 = scmp.eq.s32.totalorder %s13, 0
    %p40 = por %p38, %p39
    %p41 = scmp.ne.s32.totalorder %s33, %s35
    %p42 = scmp.eq.s32.totalorder %s18, 2
    %p43 = por %p41, %p42
    %p44 = scmp.ne.s32.totalorder %s35, %s36
    %p45 = scmp.eq.s32.totalorder %s18, 0
    %p46 = por %p44, %p45
    %p47 = scmp.ne.s32.totalorder %s35, %s36
    %p48 = scmp.eq.s32.totalorder %s19, 2
    %p49 = por %p47, %p48
    %p51 = scmp.ne.s32.totalorder %s36, %s50
    %p52 = scmp.eq.s32.totalorder %s19, 0
    %p53 = por %p51, %p52
    %s54 = ssub.s32 %s21, %s28
    %p55 = scmp.eq.s32.totalorder %s54, 0
    %s57 = sadd.s32 %s56, 1
    %s58 = scalar_select %p55, %s56, %s57
    %p61 = pneg %p55
    %p62 = scmp.eq.s32.totalorder %s13, 2
    %p63 = por %p61, %p62
    %p64 = scmp.ne.s32.totalorder %s56, %s59
    %p65 = scmp.eq.s32.totalorder %s13, 0
    %p66 = por %p64, %p65
    %p67 = scmp.ne.s32.totalorder %s56, %s59
    %p68 = scmp.eq.s32.totalorder %s18, 2
    %p69 = por %p67, %p68
    %p70 = scmp.ne.s32.totalorder %s59, %s60
    %p71 = scmp.eq.s32.totalorder %s18, 0
    %p72 = por %p70, %p71
    %p73 = scmp.ne.s32.totalorder %s59, %s60
    %p74 = scmp.eq.s32.totalorder %s19, 2
    %p75 = por %p73, %p74
    %p77 = scmp.ne.s32.totalorder %s60, %s76
    %p78 = scmp.eq.s32.totalorder %s19, 0
    %p79 = por %p77, %p78
    %s81 = sadd.s32 %s80, 1
    %p84 = scmp.eq.s32.totalorder %s13, 2
    %p85 = scmp.ne.s32.totalorder %s80, %s82
    %p86 = scmp.eq.s32.totalorder %s13, 0
    %p87 = por %p85, %p86
    %p88 = scmp.ne.s32.totalorder %s80, %s82
    %p89 = scmp.eq.s32.totalorder %s18, 2
    %p90 = por %p88, %p89
    %p91 = scmp.ne.s32.totalorder %s82, %s83
    %p92 = scmp.eq.s32.totalorder %s18, 0
    %p93 = por %p91, %p92
    %p94 = scmp.ne.s32.totalorder %s82, %s83
    %p95 = scmp.eq.s32.totalorder %s19, 2
    %p96 = por %p94, %p95
    %p98 = scmp.ne.s32.totalorder %s83, %s97
    %p99 = scmp.eq.s32.totalorder %s19, 0
    %p100 = por %p98, %p99
    %s101 = ssub.s32 %s20, %s32
    %p102 = scmp.eq.s32.totalorder %s101, 0
    %s104 = sadd.s32 %s103, 1
    %s105 = scalar_select %p102, %s103, %s104
    %p108 = pneg %p102
    %p109 = scmp.eq.s32.totalorder %s13, 2
    %p110 = por %p108, %p109
    %p111 = scmp.ne.s32.totalorder %s103, %s106
    %p112 = scmp.eq.s32.totalorder %s13, 0
    %p113 = por %p111, %p112
    %p114 = scmp.ne.s32.totalorder %s103, %s106
    %p115 = scmp.eq.s32.totalorder %s18, 2
    %p116 = por %p114, %p115
    %p117 = scmp.ne.s32.totalorder %s106, %s107
    %p118 = scmp.eq.s32.totalorder %s18, 0
    %p119 = por %p117, %p118
    %p120 = scmp.ne.s32.totalorder %s106, %s107
    %p121 = scmp.eq.s32.totalorder %s19, 2
    %p122 = por %p120, %p121
    %p124 = scmp.ne.s32.totalorder %s107, %s123
    %p125 = scmp.eq.s32.totalorder %s19, 0
    %p126 = por %p124, %p125
    %s127 = ssub.s32 %s20, %s32
    %p128 = scmp.eq.s32.totalorder %s127, 0
    %s130 = sadd.s32 %s129, 1
    %s131 = scalar_select %p128, %s129, %s130
    %p134 = pneg %p128
    %p135 = scmp.eq.s32.totalorder %s13, 2
    %p136 = por %p134, %p135
    %p137 = scmp.ne.s32.totalorder %s129, %s132
    %p138 = scmp.eq.s32.totalorder %s13, 0
    %p139 = por %p137, %p138
    %p140 = scmp.ne.s32.totalorder %s129, %s132
    %p141 = scmp.eq.s32.totalorder %s18, 2
    %p142 = por %p140, %p141
    %p143 = scmp.ne.s32.totalorder %s132, %s133
    %p144 = scmp.eq.s32.totalorder %s18, 0
    %p145 = por %p143, %p144
    %p146 = scmp.ne.s32.totalorder %s132, %s133
    %p147 = scmp.eq.s32.totalorder %s19, 2
    %p148 = por %p146, %p147
    %p150 = scmp.ne.s32.totalorder %s133, %s149
    %p151 = scmp.eq.s32.totalorder %s19, 0
    %p152 = por %p150, %p151
    %s153 = ssub.s32 %s20, %s32
    %p154 = scmp.eq.s32.totalorder %s153, 0
    %s156 = sadd.s32 %s155, 1
    %s157 = scalar_select %p154, %s155, %s156
    %p160 = pneg %p154
    %p161 = scmp.eq.s32.totalorder %s13, 2
    %p162 = por %p160, %p161
    %p163 = scmp.ne.s32.totalorder %s155, %s158
    %p164 = scmp.eq.s32.totalorder %s13, 0
    %p165 = por %p163, %p164
    %p166 = scmp.ne.s32.totalorder %s155, %s158
    %p167 = scmp.eq.s32.totalorder %s18, 2
    %p168 = por %p166, %p167
    %p169 = scmp.ne.s32.totalorder %s158, %s159
    %p170 = scmp.eq.s32.totalorder %s18, 0
    %p171 = por %p169, %p170
    %p172 = scmp.ne.s32.totalorder %s158, %s159
    %p173 = scmp.eq.s32.totalorder %s19, 2
    %p174 = por %p172, %p173
    %p176 = scmp.ne.s32.totalorder %s159, %s175
    %p177 = scmp.eq.s32.totalorder %s19, 0
    %p178 = por %p176, %p177
    %s179 = ssub.s32 %s20, %s32
    %p180 = scmp.eq.s32.totalorder %s179, 0
    %s182 = sadd.s32 %s181, 1
    %s183 = scalar_select %p180, %s181, %s182
    %p186 = pneg %p180
    %p187 = scmp.eq.s32.totalorder %s13, 2
    %p188 = por %p186, %p187
    %p189 = scmp.ne.s32.totalorder %s181, %s184
    %p190 = scmp.eq.s32.totalorder %s13, 0
    %p191 = por %p189, %p190
    %p192 = scmp.ne.s32.totalorder %s181, %s184
    %p193 = scmp.eq.s32.totalorder %s18, 2
    %p194 = por %p192, %p193
    %p195 = scmp.ne.s32.totalorder %s184, %s185
    %p196 = scmp.eq.s32.totalorder %s18, 0
    %p197 = por %p195, %p196
    %p198 = scmp.ne.s32.totalorder %s184, %s185
    %p199 = scmp.eq.s32.totalorder %s19, 2
    %p200 = por %p198, %p199
    %p202 = scmp.ne.s32.totalorder %s185, %s201
    %p203 = scmp.eq.s32.totalorder %s19, 0
    %p204 = por %p202, %p203
    %s205 = ssub.s32 %s21, %s28
    %p206 = scmp.eq.s32.totalorder %s205, 0
    %s208 = sadd.s32 %s207, 1
    %s209 = scalar_select %p206, %s207, %s208
    %p212 = pneg %p206
    %p213 = scmp.eq.s32.totalorder %s13, 2
    %p214 = por %p212, %p213
    %p215 = scmp.ne.s32.totalorder %s207, %s210
    %p216 = scmp.eq.s32.totalorder %s13, 0
    %p217 = por %p215, %p216
    %p218 = scmp.ne.s32.totalorder %s207, %s210
    %p219 = scmp.eq.s32.totalorder %s18, 2
    %p220 = por %p218, %p219
    %p221 = scmp.ne.s32.totalorder %s210, %s211
    %p222 = scmp.eq.s32.totalorder %s18, 0
    %p223 = por %p221, %p222
    %p224 = scmp.ne.s32.totalorder %s210, %s211
    %p225 = scmp.eq.s32.totalorder %s19, 2
    %p226 = por %p224, %p225
    %p228 = scmp.ne.s32.totalorder %s211, %s227
    %p229 = scmp.eq.s32.totalorder %s19, 0
    %p230 = por %p228, %p229
    %p231 = scmp.le.s32.totalorder 1, %s13
    %p232 = scmp.lt.s32.totalorder %s13, 4
    %p233 = pnand %p231, %p232
    %p234 = pneg %p233
    // Predicated region
    $region9: #{gcn_forward.1} parent=5 // pred_check
      _
    $region10: #{gcn_forward.1} parent=5 // pred_check_branch
      %236 = sbr.rel (%p233) target = $region12
    $region11: #{gcn_forward.1} parent=5 // pred_region
      %s237 = ssub.s32 %s13, 1
      // Predicated region
      $region13: #{gcn_forward.1} parent=11 // pred_check
        %p238 = pneg %p46
      $region14: #{gcn_forward.1} parent=11 // pred_check_branch
        %240 = sbr.rel (%p238) target = $region16
      $region15: #{gcn_forward.1} parent=11 // pred_region
        _
      $region16: #{gcn_forward.1} parent=11 // pred_fallthru
        _
      // Predicated region
      $region17: #{gcn_forward.1} parent=11 // pred_check
        %p241 = pneg %p72
      $region18: #{gcn_forward.1} parent=11 // pred_check_branch
        %243 = sbr.rel (%p241) target = $region20
      $region19: #{gcn_forward.1} parent=11 // pred_region
        %s244 = smul.u32 2, %s23
        %p245 = scmp.lt.s32.totalorder %s244, 1
        %s246 = scalar_select %p245, %s244, 1
        %s247 = smul.addr %s246, 4
        %s248 = scalar_lea.vmem %s1, %s247
        %s249 = smul.u32 2, %s23
      $region20: #{gcn_forward.1} parent=11 // pred_fallthru
        _
      // Predicated region
      $region21: #{gcn_forward.1} parent=11 // pred_check
        %p250 = pneg %p93
      $region22: #{gcn_forward.1} parent=11 // pred_check_branch
        %252 = sbr.rel (%p250) target = $region24
      $region23: #{gcn_forward.1} parent=11 // pred_region
        _
      $region24: #{gcn_forward.1} parent=11 // pred_fallthru
        _
    $region12: #{gcn_forward.1} parent=5 // pred_fallthru
      _
    %p253 = scmp.lt.s32.totalorder %s13, 3
    // Predicated region
    $region25: #{gcn_forward.1} parent=5 // pred_check
      %p254 = pneg %p253
    $region26: #{gcn_forward.1} parent=5 // pred_check_branch
      %256 = sbr.rel (%p254) target = $region28
    $region27: #{gcn_forward.1} parent=5 // pred_region
      // Predicated region
      $region29: #{gcn_forward.1} parent=27 // pred_check
        %p257 = pneg %p113
      $region30: #{gcn_forward.1} parent=27 // pred_check_branch
        %259 = sbr.rel (%p257) target = $region32
      $region31: #{gcn_forward.1} parent=27 // pred_region
        %p260 = scmp.lt.s32.totalorder %s20, 2
        %s261 = scalar_select %p260, %s20, 2
        %s262 = smul.addr %s261, 16
        %s263 = smul.addr %s262, 4
        %s264 = scalar_lea.vmem %s3, %s263
      $region32: #{gcn_forward.1} parent=27 // pred_fallthru
        _
      // Predicated region
      $region33: #{gcn_forward.1} parent=27 // pred_check
        %p265 = pneg %p139
      $region34: #{gcn_forward.1} parent=27 // pred_check_branch
        %267 = sbr.rel (%p265) target = $region36
      $region35: #{gcn_forward.1} parent=27 // pred_region
        %p268 = scmp.lt.s32.totalorder %s20, 2
        %s269 = scalar_select %p268, %s20, 2
        %s270 = scalar_lea.vmem %s4, %s269
      $region36: #{gcn_forward.1} parent=27 // pred_fallthru
        _
      // Predicated region
      $region37: #{gcn_forward.1} parent=27 // pred_check
        %p271 = pneg %p165
      $region38: #{gcn_forward.1} parent=27 // pred_check_branch
        %273 = sbr.rel (%p271) target = $region40
      $region39: #{gcn_forward.1} parent=27 // pred_region
        %p274 = scmp.lt.s32.totalorder %s20, 2
        %s275 = scalar_select %p274, %s20, 2
        %s276 = scalar_lea.vmem %s5, %s275
      $region40: #{gcn_forward.1} parent=27 // pred_fallthru
        _
      // Predicated region
      $region41: #{gcn_forward.1} parent=27 // pred_check
        %p277 = pneg %p191
      $region42: #{gcn_forward.1} parent=27 // pred_check_branch
        %279 = sbr.rel (%p277) target = $region44
      $region43: #{gcn_forward.1} parent=27 // pred_region
        %p280 = scmp.lt.s32.totalorder %s20, 2
        %s281 = scalar_select %p280, %s20, 2
        %s282 = scalar_lea.vmem %s6, %s281
      $region44: #{gcn_forward.1} parent=27 // pred_fallthru
        _
    $region28: #{gcn_forward.1} parent=5 // pred_fallthru
      _
    %p283 = scmp.le.s32.totalorder 1, %s13
    %p284 = scmp.lt.s32.totalorder %s13, 4
    %p285 = pnand %p283, %p284
    %p286 = pneg %p285
    // Predicated region
    $region45: #{gcn_forward.1} parent=5 // pred_check
      _
    $region46: #{gcn_forward.1} parent=5 // pred_check_branch
      %288 = sbr.rel (%p285) target = $region48
    $region47: #{gcn_forward.1} parent=5 // pred_region
      %s289 = ssub.s32 %s13, 1
      %p290 = pneg %p46
      %p291 = pneg %p43
      %s292 = smul.u32 2, %s23
      %p293 = scmp.lt.s32.totalorder %s292, 1
      %s294 = scalar_select %p293, %s292, 1
      %s295 = smul.addr %s294, 4
      %s296 = scalar_lea.vmem %s1, %s295
      %p297 = pneg %p72
      %p298 = pneg %p69
      %p299 = pneg %p93
      %p300 = pneg %p90
      %p301 = scmp.lt.s32.totalorder %s22, 2
      %s302 = scalar_select %p301, %s22, 2
      %s303 = smul.addr %s302, 16
      %s304 = smul.addr %s303, 4
      %s305 = scalar_lea.vmem %s3, %s304
      %p306 = pneg %p119
      %p307 = pneg %p116
      %p308 = scmp.lt.s32.totalorder %s22, 2
      %s309 = scalar_select %p308, %s22, 2
      %s310 = scalar_lea.vmem %s4, %s309
      %p311 = pneg %p145
      %p312 = pneg %p142
      %p313 = scmp.lt.s32.totalorder %s22, 2
      %s314 = scalar_select %p313, %s22, 2
      %s315 = scalar_lea.vmem %s5, %s314
      %p316 = pneg %p171
      %p317 = pneg %p168
      %p318 = scmp.lt.s32.totalorder %s22, 2
      %s319 = scalar_select %p318, %s22, 2
      %s320 = scalar_lea.vmem %s6, %s319
      %p321 = pneg %p197
      %p322 = pneg %p194
      %p323 = pneg %p223
      %p324 = pneg %p220
      %s325 = smul.u32 2, %s23
      %p326 = scmp.lt.s32.totalorder %s325, 1
      %s327 = scalar_select %p326, %s325, 1
      %s328 = smul.addr %s327, 8
      %s329 = scalar_lea.vmem %s7, %s328
      %s330 = smul.u32 2, %s23
      %p331 = scmp.lt.s32.totalorder %s330, 1
      %s332 = scalar_select %p331, %s330, 1
      %s333 = smul.addr %s332, 4
      %s334 = scalar_lea.vmem %s1, %s333
      %s335 = smul.u32 2, %s23
      %p336 = scmp.lt.s32.totalorder %s22, 2
      %s337 = scalar_select %p336, %s22, 2
      %s338 = smul.addr %s337, 16
      %s339 = smul.addr %s338, 4
      %s340 = scalar_lea.vmem %s3, %s339
      %p341 = scmp.lt.s32.totalorder %s22, 2
      %s342 = scalar_select %p341, %s22, 2
      %s343 = scalar_lea.vmem %s4, %s342
      %p344 = scmp.lt.s32.totalorder %s22, 2
      %s345 = scalar_select %p344, %s22, 2
      %s346 = scalar_lea.vmem %s5, %s345
      %p347 = scmp.lt.s32.totalorder %s22, 2
      %s348 = scalar_select %p347, %s22, 2
      %s349 = scalar_lea.vmem %s6, %s348
      %s350 = smul.u32 2, %s23
      %p351 = scmp.lt.s32.totalorder %s350, 1
      %s352 = scalar_select %p351, %s350, 1
      %s353 = smul.addr %s352, 8
      %s354 = scalar_lea.vmem %s7, %s353
      %s355 = smul.u32 2, %s23
      %p357 = scmp.eq.s32.totalorder %s23, 0
      %p358 = scmp.eq.s32.totalorder %s22, 0
      %p359 = pnand %p357, %p358
      %p360 = pneg %p359
      // Predicated region
      $region49: #{gcn_forward.1} parent=47 // pred_check
        _
      $region50: #{gcn_forward.1} parent=47 // pred_check_branch
        %362 = sbr.rel (%p359) target = $region52
      $region51: #{gcn_forward.1} parent=47 // pred_region
        %v363 = vld [vmem:[%s0] sm:$0xf]
        %v364 = vld [vmem:[%s0 + $0x4] sm:$0xf]
        %v365 = vld [vmem:[%s2] sm:$0xf]
        %v366 = vld [vmem:[%s2 + $0x4] sm:$0xf]
        %v367 = vld [vmem:[%s2 + $0x8] sm:$0xf]
        %v368 = vld [vmem:[%s2 + $0xc] sm:$0xf]
        %v369 = vld [vmem:[%s2 + $0x10] sm:$0xf]
        %v370 = vld [vmem:[%s2 + $0x14] sm:$0xf]
        %v371 = vld [vmem:[%s2 + $0x18] sm:$0xf]
        %v372 = vld [vmem:[%s2 + $0x1c] sm:$0xf]
        %v373 = vld [vmem:[%s2 + $0x20] sm:$0xf]
        %v374 = vld [vmem:[%s2 + $0x24] sm:$0xf]
        %v375 = vld [vmem:[%s2 + $0x28] sm:$0xf]
        %v376 = vld [vmem:[%s2 + $0x2c] sm:$0xf]
        %v377 = vld [vmem:[%s2 + $0x30] sm:$0xf]
        %v378 = vld [vmem:[%s2 + $0x34] sm:$0xf]
        %v379 = vld [vmem:[%s2 + $0x38] sm:$0xf]
        %v380 = vld [vmem:[%s2 + $0x3c] sm:$0xf]
        %v383 = vunpack.c.l.b16 %v363
        %v384 = vunpack.c.l.b16 %v364
        %v385 = vpack.c.b16 %v384, %v383
        %v403 = vunpack.c.l.b16 %v365
        %v404 = vunpack.c.l.b16 %v366
        %v405 = vunpack.c.l.b16 %v367
        %v406 = vunpack.c.l.b16 %v368
        %v407 = vunpack.c.l.b16 %v369
        %v408 = vunpack.c.l.b16 %v370
        %v409 = vunpack.c.l.b16 %v371
        %v410 = vunpack.c.l.b16 %v372
        %v411 = vunpack.c.l.b16 %v373
        %v412 = vunpack.c.l.b16 %v374
        %v413 = vunpack.c.l.b16 %v375
        %v414 = vunpack.c.l.b16 %v376
        %v415 = vunpack.c.l.b16 %v377
        %v416 = vunpack.c.l.b16 %v378
        %v417 = vunpack.c.l.b16 %v379
        %v418 = vunpack.c.l.b16 %v380
        %v419 = vpack.c.b16 %v404, %v403
        %v420 = vpack.c.b16 %v406, %v405
        %v421 = vpack.c.b16 %v408, %v407
        %v422 = vpack.c.b16 %v410, %v409
        %v423 = vpack.c.b16 %v412, %v411
        %v424 = vpack.c.b16 %v414, %v413
        %v425 = vpack.c.b16 %v416, %v415
        %v426 = vpack.c.b16 %v418, %v417
        %435 = vmatprep.subr.bf16.mxu0 0
        %436 = vmatpush1.bf16.msra.mxu0 %v419
        %437 = vmatprep.subr.bf16.mxu0 0
        %438 = vmatpush1.bf16.msra.mxu0 %v420
        %439 = vmatprep.subr.bf16.mxu0 0
        %440 = vmatpush1.bf16.msra.mxu0 %v421
        %441 = vmatprep.subr.bf16.mxu0 0
        %442 = vmatpush1.bf16.msra.mxu0 %v422
        %443 = vmatprep.subr.bf16.mxu0 0
        %444 = vmatpush1.bf16.msra.mxu0 %v423
        %445 = vmatprep.subr.bf16.mxu0 0
        %446 = vmatpush1.bf16.msra.mxu0 %v424
        %447 = vmatprep.subr.bf16.mxu0 0
        %448 = vmatpush1.bf16.msra.mxu0 %v425
        %449 = vmatprep.subr.bf16.mxu0 0
        %450 = vmatpush1.bf16.msra.mxu0 %v426
        %451 = vmatprep.subr.bf16.mxu0 0
        %452 = vmatpush1.bf16.msra.mxu0 0
        %453 = vmatprep.subr.bf16.mxu0 0
        %454 = vmatpush1.bf16.msra.mxu0 0
        %455 = vmatprep.subr.bf16.mxu0 0
        %456 = vmatpush1.bf16.msra.mxu0 0
        %457 = vmatprep.subr.bf16.mxu0 0
        %458 = vmatpush1.bf16.msra.mxu0 0
        %459 = vmatprep.subr.bf16.mxu0 0
        %460 = vmatpush1.bf16.msra.mxu0 0
        %461 = vmatprep.subr.bf16.mxu0 0
        %462 = vmatpush1.bf16.msra.mxu0 0
        %463 = vmatprep.subr.bf16.mxu0 0
        %464 = vmatpush1.bf16.msra.mxu0 0
        %465 = vmatprep.subr.bf16.mxu0 0
        %466 = vmatpush1.bf16.msra.mxu0 0
        %467 = vmatprep.mubr.bf16.mxu0 0
        %468 = vmatmul.mubr.bf16.gmra.mrb[0].mxu0 %v385
        %v469 = vpop.f32.mrb[0].mxu0
        %v470 = vadd.f32 0.0, %v469
        %v471 = vpop.f32.mrb[0].mxu0
        %v472 = vpop.f32.mrb[0].mxu0
        %v473 = vadd.f32 0.0, %v472
        %v474 = vpop.f32.mrb[0].mxu0
        %475 = vdwg.mxu0
        %v476 = vpack.c.bf16 %v473, %v470
        %477 = vst [vmem:[#allocation3] sm:$0xff] %v476
      $region52: #{gcn_forward.1} parent=47 // pred_fallthru
        _
      %p478 = scmp.gt.s32.totalorder %s22, 0
      %p479 = pnand %p357, %p478
      %p480 = pneg %p479
      // Predicated region
      $region53: #{gcn_forward.1} parent=47 // pred_check
        _
      $region54: #{gcn_forward.1} parent=47 // pred_check_branch
        %482 = sbr.rel (%p479) target = $region56
      $region55: #{gcn_forward.1} parent=47 // pred_region
        %v483 = vld [vmem:[#allocation2] sm:$0xff]
        %v484 = vld [vmem:[#allocation2 + $0x8] sm:$0xff]
        %v485 = vadd.f32 %v483, %v484
        %v486 = vrot.slane %v485, 4
        %v487 = vadd.f32 %v485, %v486
        %v488 = vrot.slane %v487, 2
        %v489 = vadd.f32 %v487, %v488
        %v490 = vrot.slane %v489, 1
        %v491 = vadd.f32 %v489, %v490
        %v492 = vmul.f32 %v491, 0.0625
        %v493 = vsub.f32 %v483, %v492
        %v494 = vsub.f32 %v484, %v492
        %v495 = vmul.f32 %v493, %v493
        %v496 = vmul.f32 %v494, %v494
        %v497 = vadd.f32 %v495, %v496
        %v498 = vrot.slane %v497, 4
        %v499 = vadd.f32 %v497, %v498
        %v500 = vrot.slane %v499, 2
        %v501 = vadd.f32 %v499, %v500
        %v502 = vrot.slane %v501, 1
        %v503 = vadd.f32 %v501, %v502
        %v504 = vmul.f32 %v503, 0.0625
        %v505 = vadd.f32 %v504, 1e-05
        %v506 = vrsqrt.pop %v505
        %v507 = vmul.f32 %v493, %v506
        %v508 = vmul.f32 %v494, %v506
        %v509 = vld [vmem:[%s346] sm:$0x1]
        %v511 = vlaneseq
        %v512 = vshrl.u32 %v511, 7
        %v513 = vsub.s32 0, %v512
        %v514 = vrot.slane %v509, %v513
        %v516 = vmul.f32 %v507, %v514
        %v517 = vmul.f32 %v508, %v514
        %v518 = vld [vmem:[%s349] sm:$0x1]
        %v520 = vlaneseq
        %v521 = vshrl.u32 %v520, 7
        %v522 = vsub.s32 0, %v521
        %v523 = vrot.slane %v518, %v522
        %v525 = vadd.f32 %v516, %v523
        %v526 = vadd.f32 %v517, %v523
        %v527 = vmax.f32 %v525, 0.0
        %v528 = vmax.f32 %v526, 0.0
        %v529 = vpack.c.bf16 %v528, %v527
        %v530 = vld [vmem:[%s340] sm:$0xf]
        %v531 = vld [vmem:[%s340 + $0x4] sm:$0xf]
        %v532 = vld [vmem:[%s340 + $0x8] sm:$0xf]
        %v533 = vld [vmem:[%s340 + $0xc] sm:$0xf]
        %v534 = vld [vmem:[%s340 + $0x10] sm:$0xf]
        %v535 = vld [vmem:[%s340 + $0x14] sm:$0xf]
        %v536 = vld [vmem:[%s340 + $0x18] sm:$0xf]
        %v537 = vld [vmem:[%s340 + $0x1c] sm:$0xf]
        %v538 = vld [vmem:[%s340 + $0x20] sm:$0xf]
        %v539 = vld [vmem:[%s340 + $0x24] sm:$0xf]
        %v540 = vld [vmem:[%s340 + $0x28] sm:$0xf]
        %v541 = vld [vmem:[%s340 + $0x2c] sm:$0xf]
        %v542 = vld [vmem:[%s340 + $0x30] sm:$0xf]
        %v543 = vld [vmem:[%s340 + $0x34] sm:$0xf]
        %v544 = vld [vmem:[%s340 + $0x38] sm:$0xf]
        %v545 = vld [vmem:[%s340 + $0x3c] sm:$0xf]
        %v562 = vunpack.c.l.b16 %v530
        %v563 = vunpack.c.l.b16 %v531
        %v564 = vunpack.c.l.b16 %v532
        %v565 = vunpack.c.l.b16 %v533
        %v566 = vunpack.c.l.b16 %v534
        %v567 = vunpack.c.l.b16 %v535
        %v568 = vunpack.c.l.b16 %v536
        %v569 = vunpack.c.l.b16 %v537
        %v570 = vunpack.c.l.b16 %v538
        %v571 = vunpack.c.l.b16 %v539
        %v572 = vunpack.c.l.b16 %v540
        %v573 = vunpack.c.l.b16 %v541
        %v574 = vunpack.c.l.b16 %v542
        %v575 = vunpack.c.l.b16 %v543
        %v576 = vunpack.c.l.b16 %v544
        %v577 = vunpack.c.l.b16 %v545
        %v578 = vpack.c.b16 %v563, %v562
        %v579 = vpack.c.b16 %v565, %v564
        %v580 = vpack.c.b16 %v567, %v566
        %v581 = vpack.c.b16 %v569, %v568
        %v582 = vpack.c.b16 %v571, %v570
        %v583 = vpack.c.b16 %v573, %v572
        %v584 = vpack.c.b16 %v575, %v574
        %v585 = vpack.c.b16 %v577, %v576
        %594 = vmatprep.subr.bf16.mxu0 0
        %595 = vmatpush1.bf16.msra.mxu0 %v578
        %596 = vmatprep.subr.bf16.mxu0 0
        %597 = vmatpush1.bf16.msra.mxu0 %v579
        %598 = vmatprep.subr.bf16.mxu0 0
        %599 = vmatpush1.bf16.msra.mxu0 %v580
        %600 = vmatprep.subr.bf16.mxu0 0
        %601 = vmatpush1.bf16.msra.mxu0 %v581
        %602 = vmatprep.subr.bf16.mxu0 0
        %603 = vmatpush1.bf16.msra.mxu0 %v582
        %604 = vmatprep.subr.bf16.mxu0 0
        %605 = vmatpush1.bf16.msra.mxu0 %v583
        %606 = vmatprep.subr.bf16.mxu0 0
        %607 = vmatpush1.bf16.msra.mxu0 %v584
        %608 = vmatprep.subr.bf16.mxu0 0
        %609 = vmatpush1.bf16.msra.mxu0 %v585
        %610 = vmatprep.subr.bf16.mxu0 0
        %611 = vmatpush1.bf16.msra.mxu0 0
        %612 = vmatprep.subr.bf16.mxu0 0
        %613 = vmatpush1.bf16.msra.mxu0 0
        %614 = vmatprep.subr.bf16.mxu0 0
        %615 = vmatpush1.bf16.msra.mxu0 0
        %616 = vmatprep.subr.bf16.mxu0 0
        %617 = vmatpush1.bf16.msra.mxu0 0
        %618 = vmatprep.subr.bf16.mxu0 0
        %619 = vmatpush1.bf16.msra.mxu0 0
        %620 = vmatprep.subr.bf16.mxu0 0
        %621 = vmatpush1.bf16.msra.mxu0 0
        %622 = vmatprep.subr.bf16.mxu0 0
        %623 = vmatpush1.bf16.msra.mxu0 0
        %624 = vmatprep.subr.bf16.mxu0 0
        %625 = vmatpush1.bf16.msra.mxu0 0
        %626 = vmatprep.mubr.bf16.mxu0 0
        %627 = vmatmul.mubr.bf16.gmra.mrb[0].mxu0 %v529
        %v628 = vpop.f32.mrb[0].mxu0
        %v629 = vadd.f32 0.0, %v628
        %v630 = vpop.f32.mrb[0].mxu0
        %v631 = vpop.f32.mrb[0].mxu0
        %v632 = vadd.f32 0.0, %v631
        %v633 = vpop.f32.mrb[0].mxu0
        %634 = vdwg.mxu0
        %v635 = vpack.c.bf16 %v632, %v629
        %636 = vst [vmem:[#allocation3] sm:$0xff] %v635
      $region56: #{gcn_forward.1} parent=47 // pred_fallthru
        _
      %v637 = vld [vmem:[%s334] sm:$0xf]
      %v638 = vld [vmem:[%s334 + $0x4] sm:$0xf]
      %v639 = vld [vmem:[#allocation3] sm:$0xff]
      %v640 = vld [vmem:[%s343] sm:$0x1]
      %v642 = vlaneseq
      %v643 = vshrl.u32 %v642, 7
      %v644 = vsub.s32 0, %v643
      %v645 = vrot.slane %v640, %v644
      %v649 = vunpack.c.l.b16 %v637
      %v650 = vunpack.c.l.b16 %v638
      %v651 = vpack.c.b16 %v650, %v649
      %vm652 = vcmask 130048
      %v654 = vsel %vm652, %v651, 0
      %656 = vmatprep.subr.bf16.mxu0 0
      %657 = vmatpush1.bf16.msra.mxu0 %v639
      %658 = vmatprep.subr.bf16.mxu0 0
      %659 = vmatpush1.bf16.msra.mxu0 0
      %660 = vmatprep.subr.bf16.mxu0 0
      %661 = vmatpush1.bf16.msra.mxu0 0
      %662 = vmatprep.subr.bf16.mxu0 0
      %663 = vmatpush1.bf16.msra.mxu0 0
      %664 = vmatprep.subr.bf16.mxu0 0
      %665 = vmatpush1.bf16.msra.mxu0 0
      %666 = vmatprep.subr.bf16.mxu0 0
      %667 = vmatpush1.bf16.msra.mxu0 0
      %668 = vmatprep.subr.bf16.mxu0 0
      %669 = vmatpush1.bf16.msra.mxu0 0
      %670 = vmatprep.subr.bf16.mxu0 0
      %671 = vmatpush1.bf16.msra.mxu0 0
      %672 = vmatprep.subr.bf16.mxu0 0
      %673 = vmatpush1.bf16.msra.mxu0 0
      %674 = vmatprep.subr.bf16.mxu0 0
      %675 = vmatpush1.bf16.msra.mxu0 0
      %676 = vmatprep.subr.bf16.mxu0 0
      %677 = vmatpush1.bf16.msra.mxu0 0
      %678 = vmatprep.subr.bf16.mxu0 0
      %679 = vmatpush1.bf16.msra.mxu0 0
      %680 = vmatprep.subr.bf16.mxu0 0
      %681 = vmatpush1.bf16.msra.mxu0 0
      %682 = vmatprep.subr.bf16.mxu0 0
      %683 = vmatpush1.bf16.msra.mxu0 0
      %684 = vmatprep.subr.bf16.mxu0 0
      %685 = vmatpush1.bf16.msra.mxu0 0
      %686 = vmatprep.subr.bf16.mxu0 0
      %687 = vmatpush1.bf16.msra.mxu0 0
      %688 = vmatprep.mubr.bf16.mxu0 0
      %689 = vmatmul.mubr.bf16.gmra.mrb[0].mxu0 %v654
      %v690 = vpop.f32.mrb[0].mxu0
      %v691 = vadd.f32 %v645, %v690
      %v692 = vpop.f32.mrb[0].mxu0
      %v693 = vpop.f32.mrb[0].mxu0
      %v694 = vadd.f32 %v645, %v693
      %v695 = vpop.f32.mrb[0].mxu0
      %696 = vdwg.mxu0
      %p697 = scmp.lt.s32.totalorder %s22, 2
      // Predicated region
      $region57: #{gcn_forward.1} parent=47 // pred_check
        %p698 = pneg %p697
      $region58: #{gcn_forward.1} parent=47 // pred_check_branch
        %700 = sbr.rel (%p698) target = $region60
      $region59: #{gcn_forward.1} parent=47 // pred_region
        %s701 = smul.u32 %s23, 16
        %s702 = scalar_lea.vmem [#allocation2], %s701
        %703 = vst [vmem:[%s702] sm:$0xff] %v691
        %704 = vst [vmem:[%s702 + $0x8] sm:$0xff] %v694
      $region60: #{gcn_forward.1} parent=47 // pred_fallthru
        _
      %p705 = scmp.eq.s32.totalorder %s22, 2
      // Predicated region
      $region61: #{gcn_forward.1} parent=47 // pred_check
        %p706 = pneg %p705
      $region62: #{gcn_forward.1} parent=47 // pred_check_branch
        %708 = sbr.rel (%p706) target = $region64
      $region63: #{gcn_forward.1} parent=47 // pred_region
        %709 = vmax.xlane.f32.xlu0 %v691
        %v710 = vpop.xlane.xlu0 %709
        %711 = vmax.xlane.f32.xlu0 %v694
        %v712 = vpop.xlane.xlu0 %711
        %v713 = vsub.f32 %v691, %v710
        %v714 = vsub.f32 %v694, %v712
        %v715 = vmul.f32 %v713, 1.442695
        %v716 = vpow.pop %v715
        %v717 = vmul.f32 %v714, 1.442695
        %v718 = vpow.pop %v717
        %719 = vadd.xlane.f32.xlu0 %v716
        %v720 = vpop.xlane.xlu0 %719
        %721 = vadd.xlane.f32.xlu0 %v718
        %v722 = vpop.xlane.xlu0 %721
        %v723 = vlog2.pop %v720
        %v724 = vmul.f32 %v723, 0.6931472
        %v725 = vlog2.pop %v722
        %v726 = vmul.f32 %v725, 0.6931472
        %v727 = vsub.f32 %v713, %v724
        %v728 = vsub.f32 %v714, %v726
        %729 = vst [vmem:[%s354] sm:$0xff] %v727
        %730 = vst [vmem:[%s354 + $0x8] sm:$0xff] %v728
      $region64: #{gcn_forward.1} parent=47 // pred_fallthru
        _
      %s731 = smul.u32 2, %s23
      %p732 = scmp.lt.s32.totalorder %s731, 1
      %s733 = scalar_select %p732, %s731, 1
      %s734 = smul.addr %s733, 8
      %s735 = scalar_lea.vmem %s7, %s734
      // Predicated region
      $region65: #{gcn_forward.1} parent=47 // pred_check
        %p736 = pneg %p220
      $region66: #{gcn_forward.1} parent=47 // pred_check_branch
        %738 = sbr.rel (%p736) target = $region68
      $region67: #{gcn_forward.1} parent=47 // pred_region
        %s739 = smul.u32 2, %s23
      $region68: #{gcn_forward.1} parent=47 // pred_fallthru
        _
      // Predicated region
      $region69: #{gcn_forward.1} parent=47 // pred_check
        %p740 = pneg %p220
      $region70: #{gcn_forward.1} parent=47 // pred_check_branch
        %742 = sbr.rel (%p740) target = $region72
      $region71: #{gcn_forward.1} parent=47 // pred_region
        %s743 = smul.u32 2, %s23
        %p744 = scmp.lt.s32.totalorder %s743, 1
        %s745 = scalar_select %p744, %s743, 1
        %s746 = smul.addr %s745, 8
        %s747 = scalar_lea.vmem %s7, %s746
      $region72: #{gcn_forward.1} parent=47 // pred_fallthru
        _
    $region48: #{gcn_forward.1} parent=5 // pred_fallthru
      _
    %p748 = scmp.le.s32.totalorder 2, %s13
    // Predicated region
    $region73: #{gcn_forward.1} parent=5 // pred_check
      %p749 = pneg %p748
    $region74: #{gcn_forward.1} parent=5 // pred_check_branch
      %751 = sbr.rel (%p749) target = $region76
    $region75: #{gcn_forward.1} parent=5 // pred_region
      %s752 = ssub.s32 %s13, 2
    $region76: #{gcn_forward.1} parent=5 // pred_fallthru
      _
  $region6: #{gcn_forward.1} parent=0 // loop_footer
    %s17 = sadd.s32 1, %s13
  $region7: #{gcn_forward.1} parent=0 // loop_footer_branch
    %12 = sbr.rel target = $region3
  $region8: #{gcn_forward.1} parent=0 // loop_exit
    _

</llo_original>
